<compile_context>
chip_gen: v6e
topology: v6e:2x2x1
jax: 0.10.0
libtpu: 0.0.40
codegen_flags: <defaults>
</compile_context>

<pallas_src>
from functools import partial

import jax
import jax.numpy as jnp
from jax import lax
from jax.experimental import pallas as pl
from jax.experimental.pallas import tpu as pltpu

LANES = 128        # vreg lane width
CHUNK_ROWS = 32    # rows per register-resident inner chunk (multiple of 8)
HIDDEN = 8

# Offsets into the flat packed parameter vector (97 f32 scalars).
_W1_OFF = 0                          # (1, 8)  ->  8
_B1_OFF = _W1_OFF + HIDDEN           # (1, 8)  ->  8
_W2_OFF = _B1_OFF + HIDDEN           # (8, 8)  -> 64, row-major: w2[k, j] = _W2_OFF + k*8 + j
_B2_OFF = _W2_OFF + HIDDEN * HIDDEN  # (1, 8)  ->  8
_W3_OFF = _B2_OFF + HIDDEN           # (8, 1)  ->  8
_B3_OFF = _W3_OFF + HIDDEN           # (1, 1)  ->  1
_N_PARAMS = _B3_OFF + 1              # 97


def mlp_kernel(x_ref, p_ref, o_ref, *, compute_dtype):
    """x_ref / o_ref: (block_rows, 128) f32 VMEM tiles.  p_ref: f32[97] in SMEM."""
    block_rows = x_ref.shape[0]
    n_chunks = block_rows // CHUNK_ROWS
    cdt = compute_dtype

    # Read all 97 weights/biases as scalars once (hoisted out of the chunk loop).
    w1 = [p_ref[_W1_OFF + j].astype(cdt) for j in range(HIDDEN)]
    b1 = [p_ref[_B1_OFF + j].astype(cdt) for j in range(HIDDEN)]
    w2 = [[p_ref[_W2_OFF + k * HIDDEN + j].astype(cdt) for j in range(HIDDEN)]
          for k in range(HIDDEN)]
    b2 = [p_ref[_B2_OFF + j].astype(cdt) for j in range(HIDDEN)]
    w3 = [p_ref[_W3_OFF + j] for j in range(HIDDEN)]          # layer 3 stays f32
    b3 = p_ref[_B3_OFF]

    # Layer-3 accumulator init, hoisted (JAX does not CSE broadcasts in loops).
    out_init = jnp.full((CHUNK_ROWS, LANES), b3, dtype=jnp.float32)

    def chunk_body(c, carry):
        r = pl.multiple_of(c * CHUNK_ROWS, CHUNK_ROWS)
        xc = x_ref[pl.ds(r, CHUNK_ROWS), :].astype(cdt)

        # Layer 1: Linear(1, 8) + ReLU  -> 8 scalar-broadcast mul/add/max.
        h1 = [jnp.maximum(xc * w1[j] + b1[j], 0) for j in range(HIDDEN)]

        # Layers 2 + 3 fused: out += relu(sum_k h1[k]*w2[k,j] + b2[j]) * w3[j]
        out = out_init
        for j in range(HIDDEN):
            acc = h1[0] * w2[0][j]
            for k in range(1, HIDDEN):
                acc = acc + h1[k] * w2[k][j]
            h2j = jnp.maximum(acc + b2[j], 0)
            out = out + h2j.astype(jnp.float32) * w3[j]

        o_ref[pl.ds(r, CHUNK_ROWS), :] = out.astype(o_ref.dtype)
        return carry

    lax.fori_loop(0, n_chunks, chunk_body, None, unroll=min(4, n_chunks))


@partial(jax.jit, static_argnames=("block_rows", "compute_dtype"))
def simple_regressor(x, params, *, block_rows=2048, compute_dtype=jnp.float32):
    """x: (B, 1) f32.  params: w1 (1,8), b1 (1,8), w2 (8,8), b2 (1,8), w3 (8,1),
    b3 (1,1).  Returns (B, 1) f32 matching PyTorch SimpleRegressor.forward."""
    B, input_dim = x.shape
    assert input_dim == 1, "kernel layout assumes input_dim == 1"
    assert params["w1"].shape == (1, HIDDEN)
    assert params["w2"].shape == (HIDDEN, HIDDEN)
    assert params["w3"].shape == (HIDDEN, 1)

    # One flat f32[97] parameter vector -> single tiny SMEM buffer / DMA.
    p_flat = jnp.concatenate([
        params["w1"].reshape(-1), params["b1"].reshape(-1),
        params["w2"].reshape(-1), params["b2"].reshape(-1),
        params["w3"].reshape(-1), params["b3"].reshape(-1),
    ]).astype(jnp.float32)
    assert p_flat.shape == (_N_PARAMS,)

    # ---- batch-on-lanes layout: flatten, pad, reshape to (total_rows, 128) ----
    rows_needed = pl.cdiv(B, LANES)
    rows_needed = pl.cdiv(rows_needed, CHUNK_ROWS) * CHUNK_ROWS
    block_rows = max(CHUNK_ROWS, min(block_rows, rows_needed))
    block_rows = (block_rows // CHUNK_ROWS) * CHUNK_ROWS
    # Keep >= 2 blocks when there is enough work so the "parallel" grid axis can
    # feed both v7x TensorCores (also bounds per-block VMEM).
    if rows_needed >= 2 * CHUNK_ROWS:
        half = pl.cdiv(pl.cdiv(rows_needed, 2), CHUNK_ROWS) * CHUNK_ROWS
        block_rows = min(block_rows, half)
    n_blocks = pl.cdiv(rows_needed, block_rows)
    # Re-balance so blocks (nearly) divide the work -> minimal over-padding.
    block_rows = pl.cdiv(pl.cdiv(rows_needed, n_blocks), CHUNK_ROWS) * CHUNK_ROWS
    total_rows = n_blocks * block_rows
    padded = total_rows * LANES

    x_flat = jnp.pad(x.reshape(-1), (0, padded - B)).reshape(total_rows, LANES)

    out2d = pl.pallas_call(
        partial(mlp_kernel, compute_dtype=compute_dtype),
        out_shape=jax.ShapeDtypeStruct((total_rows, LANES), jnp.float32),
        grid_spec=pltpu.PrefetchScalarGridSpec(
            num_scalar_prefetch=0,
            grid=(n_blocks,),
            in_specs=[
                pl.BlockSpec((block_rows, LANES), lambda i: (i, 0)),  # x (lane-dense)
                pl.BlockSpec(memory_space=pltpu.MemorySpace.SMEM),    # packed params
            ],
            out_specs=pl.BlockSpec((block_rows, LANES), lambda i: (i, 0)),
        ),
        compiler_params=pltpu.CompilerParams(
            dimension_semantics=("parallel",),
        ),
    )(x_flat, p_flat)

    # Drop padding, restore (B, 1).  Fuses with the kernel under this jit.
    return out2d.reshape(-1)[:B].reshape(B, 1).astype(x.dtype)


def init_params(key, input_dim=1, hidden_dim=8, output_dim=1):
    """PyTorch nn.Linear-style init (U[-1/sqrt(fan_in), 1/sqrt(fan_in)]).
    Weights stored as (in_features, out_features); biases as (1, out_features)."""
    ks = jax.random.split(key, 6)

    def lin(kw, kb, fan_in, fan_out):
        bound = 1.0 / jnp.sqrt(jnp.float32(fan_in))
        w = jax.random.uniform(kw, (fan_in, fan_out), jnp.float32, -bound, bound)
        b = jax.random.uniform(kb, (1, fan_out), jnp.float32, -bound, bound)
        return w, b

    w1, b1 = lin(ks[0], ks[1], input_dim, hidden_dim)
    w2, b2 = lin(ks[2], ks[3], hidden_dim, hidden_dim)
    w3, b3 = lin(ks[4], ks[5], hidden_dim, output_dim)
    return {"w1": w1, "b1": b1, "w2": w2, "b2": b2, "w3": w3, "b3": b3}


def reference_forward(x, p):
    mm = partial(jnp.matmul, precision=jax.lax.Precision.HIGHEST)
    h1 = jnp.maximum(mm(x, p["w1"]) + p["b1"], 0.0)
    h2 = jnp.maximum(mm(h1, p["w2"]) + p["b2"], 0.0)
    return mm(h2, p["w3"]) + p["b3"]


if __name__ == "__main__":
    key = jax.random.PRNGKey(0)
    k_param, k_small, k_big = jax.random.split(key, 3)

    params = init_params(k_param)

    # Small ragged batch: exercises padding + single-block, single-chunk path.
    x_small = jax.random.normal(k_small, (37, 1), jnp.float32)
    y_small = jax.block_until_ready(simple_regressor(x_small, params))
    y_small_ref = reference_forward(x_small, params)
    assert y_small.shape == (37, 1)
    assert jnp.allclose(y_small, y_small_ref, atol=1e-5, rtol=1e-5)

    # Bigger batch: 2 grid blocks ("parallel" axis) x 2 row-chunks per block.
    x_big = jax.random.normal(k_big, (12345, 1), jnp.float32)
    y_big = jax.block_until_ready(simple_regressor(x_big, params))
    y_big_ref = reference_forward(x_big, params)
    assert y_big.shape == (12345, 1)
    assert jnp.allclose(y_big, y_big_ref, atol=1e-5, rtol=1e-5)

    # Optional bf16 hidden-layer fast path (v6e/v7x); layer-3 accumulation and
    # the store stay f32, so only a loose accuracy bound applies.
    y_bf16 = jax.block_until_ready(
        simple_regressor(x_big, params, compute_dtype=jnp.bfloat16))
    assert y_bf16.shape == (12345, 1)
    assert bool(jnp.max(jnp.abs(y_bf16 - y_big_ref)) < 0.5)

    print("KERNEL_OK")
</pallas_src>

<mosaic_0001>
module attributes {stable_mosaic.version = 11 : i64} {
  func.func @mlp_kernel(%arg0: i32, %arg1: memref<32x128xf32, #tpu.memory_space<vmem>>, %arg2: memref<97xf32, #tpu.memory_space<smem>>, %arg3: memref<32x128xf32, #tpu.memory_space<vmem>>) attributes {dimension_semantics = [#tpu.dimension_semantics<parallel>], iteration_bounds = array<i64: 1>, scalar_prefetch = 0 : i64, scratch_operands = 0 : i64, tpu.core_type = #tpu.core_type<tc>, window_params = [{transform_indices = @transform_0, window_bounds = array<i64: 32, 128>}, {transform_indices = @transform_1, window_bounds = array<i64: 97>}, {transform_indices = @transform_2, window_bounds = array<i64: 32, 128>}]} {
    %c0 = arith.constant 0 : index
    %0 = memref.load %arg2[%c0] : memref<97xf32, #tpu.memory_space<smem>>
    %c1 = arith.constant 1 : index
    %1 = memref.load %arg2[%c1] : memref<97xf32, #tpu.memory_space<smem>>
    %c2 = arith.constant 2 : index
    %2 = memref.load %arg2[%c2] : memref<97xf32, #tpu.memory_space<smem>>
    %c3 = arith.constant 3 : index
    %3 = memref.load %arg2[%c3] : memref<97xf32, #tpu.memory_space<smem>>
    %c4 = arith.constant 4 : index
    %4 = memref.load %arg2[%c4] : memref<97xf32, #tpu.memory_space<smem>>
    %c5 = arith.constant 5 : index
    %5 = memref.load %arg2[%c5] : memref<97xf32, #tpu.memory_space<smem>>
    %c6 = arith.constant 6 : index
    %6 = memref.load %arg2[%c6] : memref<97xf32, #tpu.memory_space<smem>>
    %c7 = arith.constant 7 : index
    %7 = memref.load %arg2[%c7] : memref<97xf32, #tpu.memory_space<smem>>
    %c8 = arith.constant 8 : index
    %8 = memref.load %arg2[%c8] : memref<97xf32, #tpu.memory_space<smem>>
    %c9 = arith.constant 9 : index
    %9 = memref.load %arg2[%c9] : memref<97xf32, #tpu.memory_space<smem>>
    %c10 = arith.constant 10 : index
    %10 = memref.load %arg2[%c10] : memref<97xf32, #tpu.memory_space<smem>>
    %c11 = arith.constant 11 : index
    %11 = memref.load %arg2[%c11] : memref<97xf32, #tpu.memory_space<smem>>
    %c12 = arith.constant 12 : index
    %12 = memref.load %arg2[%c12] : memref<97xf32, #tpu.memory_space<smem>>
    %c13 = arith.constant 13 : index
    %13 = memref.load %arg2[%c13] : memref<97xf32, #tpu.memory_space<smem>>
    %c14 = arith.constant 14 : index
    %14 = memref.load %arg2[%c14] : memref<97xf32, #tpu.memory_space<smem>>
    %c15 = arith.constant 15 : index
    %15 = memref.load %arg2[%c15] : memref<97xf32, #tpu.memory_space<smem>>
    %c16 = arith.constant 16 : index
    %16 = memref.load %arg2[%c16] : memref<97xf32, #tpu.memory_space<smem>>
    %c17 = arith.constant 17 : index
    %17 = memref.load %arg2[%c17] : memref<97xf32, #tpu.memory_space<smem>>
    %c18 = arith.constant 18 : index
    %18 = memref.load %arg2[%c18] : memref<97xf32, #tpu.memory_space<smem>>
    %c19 = arith.constant 19 : index
    %19 = memref.load %arg2[%c19] : memref<97xf32, #tpu.memory_space<smem>>
    %c20 = arith.constant 20 : index
    %20 = memref.load %arg2[%c20] : memref<97xf32, #tpu.memory_space<smem>>
    %c21 = arith.constant 21 : index
    %21 = memref.load %arg2[%c21] : memref<97xf32, #tpu.memory_space<smem>>
    %c22 = arith.constant 22 : index
    %22 = memref.load %arg2[%c22] : memref<97xf32, #tpu.memory_space<smem>>
    %c23 = arith.constant 23 : index
    %23 = memref.load %arg2[%c23] : memref<97xf32, #tpu.memory_space<smem>>
    %c24 = arith.constant 24 : index
    %24 = memref.load %arg2[%c24] : memref<97xf32, #tpu.memory_space<smem>>
    %c25 = arith.constant 25 : index
    %25 = memref.load %arg2[%c25] : memref<97xf32, #tpu.memory_space<smem>>
    %c26 = arith.constant 26 : index
    %26 = memref.load %arg2[%c26] : memref<97xf32, #tpu.memory_space<smem>>
    %c27 = arith.constant 27 : index
    %27 = memref.load %arg2[%c27] : memref<97xf32, #tpu.memory_space<smem>>
    %c28 = arith.constant 28 : index
    %28 = memref.load %arg2[%c28] : memref<97xf32, #tpu.memory_space<smem>>
    %c29 = arith.constant 29 : index
    %29 = memref.load %arg2[%c29] : memref<97xf32, #tpu.memory_space<smem>>
    %c30 = arith.constant 30 : index
    %30 = memref.load %arg2[%c30] : memref<97xf32, #tpu.memory_space<smem>>
    %c31 = arith.constant 31 : index
    %31 = memref.load %arg2[%c31] : memref<97xf32, #tpu.memory_space<smem>>
    %c32 = arith.constant 32 : index
    %32 = memref.load %arg2[%c32] : memref<97xf32, #tpu.memory_space<smem>>
    %c33 = arith.constant 33 : index
    %33 = memref.load %arg2[%c33] : memref<97xf32, #tpu.memory_space<smem>>
    %c34 = arith.constant 34 : index
    %34 = memref.load %arg2[%c34] : memref<97xf32, #tpu.memory_space<smem>>
    %c35 = arith.constant 35 : index
    %35 = memref.load %arg2[%c35] : memref<97xf32, #tpu.memory_space<smem>>
    %c36 = arith.constant 36 : index
    %36 = memref.load %arg2[%c36] : memref<97xf32, #tpu.memory_space<smem>>
    %c37 = arith.constant 37 : index
    %37 = memref.load %arg2[%c37] : memref<97xf32, #tpu.memory_space<smem>>
    %c38 = arith.constant 38 : index
    %38 = memref.load %arg2[%c38] : memref<97xf32, #tpu.memory_space<smem>>
    %c39 = arith.constant 39 : index
    %39 = memref.load %arg2[%c39] : memref<97xf32, #tpu.memory_space<smem>>
    %c40 = arith.constant 40 : index
    %40 = memref.load %arg2[%c40] : memref<97xf32, #tpu.memory_space<smem>>
    %c41 = arith.constant 41 : index
    %41 = memref.load %arg2[%c41] : memref<97xf32, #tpu.memory_space<smem>>
    %c42 = arith.constant 42 : index
    %42 = memref.load %arg2[%c42] : memref<97xf32, #tpu.memory_space<smem>>
    %c43 = arith.constant 43 : index
    %43 = memref.load %arg2[%c43] : memref<97xf32, #tpu.memory_space<smem>>
    %c44 = arith.constant 44 : index
    %44 = memref.load %arg2[%c44] : memref<97xf32, #tpu.memory_space<smem>>
    %c45 = arith.constant 45 : index
    %45 = memref.load %arg2[%c45] : memref<97xf32, #tpu.memory_space<smem>>
    %c46 = arith.constant 46 : index
    %46 = memref.load %arg2[%c46] : memref<97xf32, #tpu.memory_space<smem>>
    %c47 = arith.constant 47 : index
    %47 = memref.load %arg2[%c47] : memref<97xf32, #tpu.memory_space<smem>>
    %c48 = arith.constant 48 : index
    %48 = memref.load %arg2[%c48] : memref<97xf32, #tpu.memory_space<smem>>
    %c49 = arith.constant 49 : index
    %49 = memref.load %arg2[%c49] : memref<97xf32, #tpu.memory_space<smem>>
    %c50 = arith.constant 50 : index
    %50 = memref.load %arg2[%c50] : memref<97xf32, #tpu.memory_space<smem>>
    %c51 = arith.constant 51 : index
    %51 = memref.load %arg2[%c51] : memref<97xf32, #tpu.memory_space<smem>>
    %c52 = arith.constant 52 : index
    %52 = memref.load %arg2[%c52] : memref<97xf32, #tpu.memory_space<smem>>
    %c53 = arith.constant 53 : index
    %53 = memref.load %arg2[%c53] : memref<97xf32, #tpu.memory_space<smem>>
    %c54 = arith.constant 54 : index
    %54 = memref.load %arg2[%c54] : memref<97xf32, #tpu.memory_space<smem>>
    %c55 = arith.constant 55 : index
    %55 = memref.load %arg2[%c55] : memref<97xf32, #tpu.memory_space<smem>>
    %c56 = arith.constant 56 : index
    %56 = memref.load %arg2[%c56] : memref<97xf32, #tpu.memory_space<smem>>
    %c57 = arith.constant 57 : index
    %57 = memref.load %arg2[%c57] : memref<97xf32, #tpu.memory_space<smem>>
    %c58 = arith.constant 58 : index
    %58 = memref.load %arg2[%c58] : memref<97xf32, #tpu.memory_space<smem>>
    %c59 = arith.constant 59 : index
    %59 = memref.load %arg2[%c59] : memref<97xf32, #tpu.memory_space<smem>>
    %c60 = arith.constant 60 : index
    %60 = memref.load %arg2[%c60] : memref<97xf32, #tpu.memory_space<smem>>
    %c61 = arith.constant 61 : index
    %61 = memref.load %arg2[%c61] : memref<97xf32, #tpu.memory_space<smem>>
    %c62 = arith.constant 62 : index
    %62 = memref.load %arg2[%c62] : memref<97xf32, #tpu.memory_space<smem>>
    %c63 = arith.constant 63 : index
    %63 = memref.load %arg2[%c63] : memref<97xf32, #tpu.memory_space<smem>>
    %c64 = arith.constant 64 : index
    %64 = memref.load %arg2[%c64] : memref<97xf32, #tpu.memory_space<smem>>
    %c65 = arith.constant 65 : index
    %65 = memref.load %arg2[%c65] : memref<97xf32, #tpu.memory_space<smem>>
    %c66 = arith.constant 66 : index
    %66 = memref.load %arg2[%c66] : memref<97xf32, #tpu.memory_space<smem>>
    %c67 = arith.constant 67 : index
    %67 = memref.load %arg2[%c67] : memref<97xf32, #tpu.memory_space<smem>>
    %c68 = arith.constant 68 : index
    %68 = memref.load %arg2[%c68] : memref<97xf32, #tpu.memory_space<smem>>
    %c69 = arith.constant 69 : index
    %69 = memref.load %arg2[%c69] : memref<97xf32, #tpu.memory_space<smem>>
    %c70 = arith.constant 70 : index
    %70 = memref.load %arg2[%c70] : memref<97xf32, #tpu.memory_space<smem>>
    %c71 = arith.constant 71 : index
    %71 = memref.load %arg2[%c71] : memref<97xf32, #tpu.memory_space<smem>>
    %c72 = arith.constant 72 : index
    %72 = memref.load %arg2[%c72] : memref<97xf32, #tpu.memory_space<smem>>
    %c73 = arith.constant 73 : index
    %73 = memref.load %arg2[%c73] : memref<97xf32, #tpu.memory_space<smem>>
    %c74 = arith.constant 74 : index
    %74 = memref.load %arg2[%c74] : memref<97xf32, #tpu.memory_space<smem>>
    %c75 = arith.constant 75 : index
    %75 = memref.load %arg2[%c75] : memref<97xf32, #tpu.memory_space<smem>>
    %c76 = arith.constant 76 : index
    %76 = memref.load %arg2[%c76] : memref<97xf32, #tpu.memory_space<smem>>
    %c77 = arith.constant 77 : index
    %77 = memref.load %arg2[%c77] : memref<97xf32, #tpu.memory_space<smem>>
    %c78 = arith.constant 78 : index
    %78 = memref.load %arg2[%c78] : memref<97xf32, #tpu.memory_space<smem>>
    %c79 = arith.constant 79 : index
    %79 = memref.load %arg2[%c79] : memref<97xf32, #tpu.memory_space<smem>>
    %c80 = arith.constant 80 : index
    %80 = memref.load %arg2[%c80] : memref<97xf32, #tpu.memory_space<smem>>
    %c81 = arith.constant 81 : index
    %81 = memref.load %arg2[%c81] : memref<97xf32, #tpu.memory_space<smem>>
    %c82 = arith.constant 82 : index
    %82 = memref.load %arg2[%c82] : memref<97xf32, #tpu.memory_space<smem>>
    %c83 = arith.constant 83 : index
    %83 = memref.load %arg2[%c83] : memref<97xf32, #tpu.memory_space<smem>>
    %c84 = arith.constant 84 : index
    %84 = memref.load %arg2[%c84] : memref<97xf32, #tpu.memory_space<smem>>
    %c85 = arith.constant 85 : index
    %85 = memref.load %arg2[%c85] : memref<97xf32, #tpu.memory_space<smem>>
    %c86 = arith.constant 86 : index
    %86 = memref.load %arg2[%c86] : memref<97xf32, #tpu.memory_space<smem>>
    %c87 = arith.constant 87 : index
    %87 = memref.load %arg2[%c87] : memref<97xf32, #tpu.memory_space<smem>>
    %c88 = arith.constant 88 : index
    %88 = memref.load %arg2[%c88] : memref<97xf32, #tpu.memory_space<smem>>
    %c89 = arith.constant 89 : index
    %89 = memref.load %arg2[%c89] : memref<97xf32, #tpu.memory_space<smem>>
    %c90 = arith.constant 90 : index
    %90 = memref.load %arg2[%c90] : memref<97xf32, #tpu.memory_space<smem>>
    %c91 = arith.constant 91 : index
    %91 = memref.load %arg2[%c91] : memref<97xf32, #tpu.memory_space<smem>>
    %c92 = arith.constant 92 : index
    %92 = memref.load %arg2[%c92] : memref<97xf32, #tpu.memory_space<smem>>
    %c93 = arith.constant 93 : index
    %93 = memref.load %arg2[%c93] : memref<97xf32, #tpu.memory_space<smem>>
    %c94 = arith.constant 94 : index
    %94 = memref.load %arg2[%c94] : memref<97xf32, #tpu.memory_space<smem>>
    %c95 = arith.constant 95 : index
    %95 = memref.load %arg2[%c95] : memref<97xf32, #tpu.memory_space<smem>>
    %c96 = arith.constant 96 : index
    %96 = memref.load %arg2[%c96] : memref<97xf32, #tpu.memory_space<smem>>
    %97 = vector.broadcast %96 : f32 to vector<32x128xf32>
    %c0_i32 = arith.constant 0 : i32
    %c32_i32 = arith.constant 32 : i32
    %98 = arith.muli %c0_i32, %c32_i32 : i32
    %99 = tpu.assume_multiple %98, 32 : i32
    %100 = arith.index_cast %99 : i32 to index
    %c0_0 = arith.constant 0 : index
    %101 = vector.load %arg1[%100, %c0_0] : memref<32x128xf32, #tpu.memory_space<vmem>>, vector<32x128xf32>
    %102 = vector.broadcast %0 : f32 to vector<32x128xf32>
    %103 = arith.mulf %101, %102 : vector<32x128xf32>
    %104 = vector.broadcast %8 : f32 to vector<32x128xf32>
    %105 = arith.addf %103, %104 : vector<32x128xf32>
    %cst = arith.constant 0.000000e+00 : f32
    %106 = vector.broadcast %cst : f32 to vector<32x128xf32>
    %107 = arith.maximumf %105, %106 : vector<32x128xf32>
    %108 = vector.broadcast %1 : f32 to vector<32x128xf32>
    %109 = arith.mulf %101, %108 : vector<32x128xf32>
    %110 = vector.broadcast %9 : f32 to vector<32x128xf32>
    %111 = arith.addf %109, %110 : vector<32x128xf32>
    %cst_1 = arith.constant 0.000000e+00 : f32
    %112 = vector.broadcast %cst_1 : f32 to vector<32x128xf32>
    %113 = arith.maximumf %111, %112 : vector<32x128xf32>
    %114 = vector.broadcast %2 : f32 to vector<32x128xf32>
    %115 = arith.mulf %101, %114 : vector<32x128xf32>
    %116 = vector.broadcast %10 : f32 to vector<32x128xf32>
    %117 = arith.addf %115, %116 : vector<32x128xf32>
    %cst_2 = arith.constant 0.000000e+00 : f32
    %118 = vector.broadcast %cst_2 : f32 to vector<32x128xf32>
    %119 = arith.maximumf %117, %118 : vector<32x128xf32>
    %120 = vector.broadcast %3 : f32 to vector<32x128xf32>
    %121 = arith.mulf %101, %120 : vector<32x128xf32>
    %122 = vector.broadcast %11 : f32 to vector<32x128xf32>
    %123 = arith.addf %121, %122 : vector<32x128xf32>
    %cst_3 = arith.constant 0.000000e+00 : f32
    %124 = vector.broadcast %cst_3 : f32 to vector<32x128xf32>
    %125 = arith.maximumf %123, %124 : vector<32x128xf32>
    %126 = vector.broadcast %4 : f32 to vector<32x128xf32>
    %127 = arith.mulf %101, %126 : vector<32x128xf32>
    %128 = vector.broadcast %12 : f32 to vector<32x128xf32>
    %129 = arith.addf %127, %128 : vector<32x128xf32>
    %cst_4 = arith.constant 0.000000e+00 : f32
    %130 = vector.broadcast %cst_4 : f32 to vector<32x128xf32>
    %131 = arith.maximumf %129, %130 : vector<32x128xf32>
    %132 = vector.broadcast %5 : f32 to vector<32x128xf32>
    %133 = arith.mulf %101, %132 : vector<32x128xf32>
    %134 = vector.broadcast %13 : f32 to vector<32x128xf32>
    %135 = arith.addf %133, %134 : vector<32x128xf32>
    %cst_5 = arith.constant 0.000000e+00 : f32
    %136 = vector.broadcast %cst_5 : f32 to vector<32x128xf32>
    %137 = arith.maximumf %135, %136 : vector<32x128xf32>
    %138 = vector.broadcast %6 : f32 to vector<32x128xf32>
    %139 = arith.mulf %101, %138 : vector<32x128xf32>
    %140 = vector.broadcast %14 : f32 to vector<32x128xf32>
    %141 = arith.addf %139, %140 : vector<32x128xf32>
    %cst_6 = arith.constant 0.000000e+00 : f32
    %142 = vector.broadcast %cst_6 : f32 to vector<32x128xf32>
    %143 = arith.maximumf %141, %142 : vector<32x128xf32>
    %144 = vector.broadcast %7 : f32 to vector<32x128xf32>
    %145 = arith.mulf %101, %144 : vector<32x128xf32>
    %146 = vector.broadcast %15 : f32 to vector<32x128xf32>
    %147 = arith.addf %145, %146 : vector<32x128xf32>
    %cst_7 = arith.constant 0.000000e+00 : f32
    %148 = vector.broadcast %cst_7 : f32 to vector<32x128xf32>
    %149 = arith.maximumf %147, %148 : vector<32x128xf32>
    %150 = vector.broadcast %16 : f32 to vector<32x128xf32>
    %151 = arith.mulf %107, %150 : vector<32x128xf32>
    %152 = vector.broadcast %24 : f32 to vector<32x128xf32>
    %153 = arith.mulf %113, %152 : vector<32x128xf32>
    %154 = arith.addf %151, %153 : vector<32x128xf32>
    %155 = vector.broadcast %32 : f32 to vector<32x128xf32>
    %156 = arith.mulf %119, %155 : vector<32x128xf32>
    %157 = arith.addf %154, %156 : vector<32x128xf32>
    %158 = vector.broadcast %40 : f32 to vector<32x128xf32>
    %159 = arith.mulf %125, %158 : vector<32x128xf32>
    %160 = arith.addf %157, %159 : vector<32x128xf32>
    %161 = vector.broadcast %48 : f32 to vector<32x128xf32>
    %162 = arith.mulf %131, %161 : vector<32x128xf32>
    %163 = arith.addf %160, %162 : vector<32x128xf32>
    %164 = vector.broadcast %56 : f32 to vector<32x128xf32>
    %165 = arith.mulf %137, %164 : vector<32x128xf32>
    %166 = arith.addf %163, %165 : vector<32x128xf32>
    %167 = vector.broadcast %64 : f32 to vector<32x128xf32>
    %168 = arith.mulf %143, %167 : vector<32x128xf32>
    %169 = arith.addf %166, %168 : vector<32x128xf32>
    %170 = vector.broadcast %72 : f32 to vector<32x128xf32>
    %171 = arith.mulf %149, %170 : vector<32x128xf32>
    %172 = arith.addf %169, %171 : vector<32x128xf32>
    %173 = vector.broadcast %80 : f32 to vector<32x128xf32>
    %174 = arith.addf %172, %173 : vector<32x128xf32>
    %cst_8 = arith.constant 0.000000e+00 : f32
    %175 = vector.broadcast %cst_8 : f32 to vector<32x128xf32>
    %176 = arith.maximumf %174, %175 : vector<32x128xf32>
    %177 = vector.broadcast %88 : f32 to vector<32x128xf32>
    %178 = arith.mulf %176, %177 : vector<32x128xf32>
    %179 = arith.addf %97, %178 : vector<32x128xf32>
    %180 = vector.broadcast %17 : f32 to vector<32x128xf32>
    %181 = arith.mulf %107, %180 : vector<32x128xf32>
    %182 = vector.broadcast %25 : f32 to vector<32x128xf32>
    %183 = arith.mulf %113, %182 : vector<32x128xf32>
    %184 = arith.addf %181, %183 : vector<32x128xf32>
    %185 = vector.broadcast %33 : f32 to vector<32x128xf32>
    %186 = arith.mulf %119, %185 : vector<32x128xf32>
    %187 = arith.addf %184, %186 : vector<32x128xf32>
    %188 = vector.broadcast %41 : f32 to vector<32x128xf32>
    %189 = arith.mulf %125, %188 : vector<32x128xf32>
    %190 = arith.addf %187, %189 : vector<32x128xf32>
    %191 = vector.broadcast %49 : f32 to vector<32x128xf32>
    %192 = arith.mulf %131, %191 : vector<32x128xf32>
    %193 = arith.addf %190, %192 : vector<32x128xf32>
    %194 = vector.broadcast %57 : f32 to vector<32x128xf32>
    %195 = arith.mulf %137, %194 : vector<32x128xf32>
    %196 = arith.addf %193, %195 : vector<32x128xf32>
    %197 = vector.broadcast %65 : f32 to vector<32x128xf32>
    %198 = arith.mulf %143, %197 : vector<32x128xf32>
    %199 = arith.addf %196, %198 : vector<32x128xf32>
    %200 = vector.broadcast %73 : f32 to vector<32x128xf32>
    %201 = arith.mulf %149, %200 : vector<32x128xf32>
    %202 = arith.addf %199, %201 : vector<32x128xf32>
    %203 = vector.broadcast %81 : f32 to vector<32x128xf32>
    %204 = arith.addf %202, %203 : vector<32x128xf32>
    %cst_9 = arith.constant 0.000000e+00 : f32
    %205 = vector.broadcast %cst_9 : f32 to vector<32x128xf32>
    %206 = arith.maximumf %204, %205 : vector<32x128xf32>
    %207 = vector.broadcast %89 : f32 to vector<32x128xf32>
    %208 = arith.mulf %206, %207 : vector<32x128xf32>
    %209 = arith.addf %179, %208 : vector<32x128xf32>
    %210 = vector.broadcast %18 : f32 to vector<32x128xf32>
    %211 = arith.mulf %107, %210 : vector<32x128xf32>
    %212 = vector.broadcast %26 : f32 to vector<32x128xf32>
    %213 = arith.mulf %113, %212 : vector<32x128xf32>
    %214 = arith.addf %211, %213 : vector<32x128xf32>
    %215 = vector.broadcast %34 : f32 to vector<32x128xf32>
    %216 = arith.mulf %119, %215 : vector<32x128xf32>
    %217 = arith.addf %214, %216 : vector<32x128xf32>
    %218 = vector.broadcast %42 : f32 to vector<32x128xf32>
    %219 = arith.mulf %125, %218 : vector<32x128xf32>
    %220 = arith.addf %217, %219 : vector<32x128xf32>
    %221 = vector.broadcast %50 : f32 to vector<32x128xf32>
    %222 = arith.mulf %131, %221 : vector<32x128xf32>
    %223 = arith.addf %220, %222 : vector<32x128xf32>
    %224 = vector.broadcast %58 : f32 to vector<32x128xf32>
    %225 = arith.mulf %137, %224 : vector<32x128xf32>
    %226 = arith.addf %223, %225 : vector<32x128xf32>
    %227 = vector.broadcast %66 : f32 to vector<32x128xf32>
    %228 = arith.mulf %143, %227 : vector<32x128xf32>
    %229 = arith.addf %226, %228 : vector<32x128xf32>
    %230 = vector.broadcast %74 : f32 to vector<32x128xf32>
    %231 = arith.mulf %149, %230 : vector<32x128xf32>
    %232 = arith.addf %229, %231 : vector<32x128xf32>
    %233 = vector.broadcast %82 : f32 to vector<32x128xf32>
    %234 = arith.addf %232, %233 : vector<32x128xf32>
    %cst_10 = arith.constant 0.000000e+00 : f32
    %235 = vector.broadcast %cst_10 : f32 to vector<32x128xf32>
    %236 = arith.maximumf %234, %235 : vector<32x128xf32>
    %237 = vector.broadcast %90 : f32 to vector<32x128xf32>
    %238 = arith.mulf %236, %237 : vector<32x128xf32>
    %239 = arith.addf %209, %238 : vector<32x128xf32>
    %240 = vector.broadcast %19 : f32 to vector<32x128xf32>
    %241 = arith.mulf %107, %240 : vector<32x128xf32>
    %242 = vector.broadcast %27 : f32 to vector<32x128xf32>
    %243 = arith.mulf %113, %242 : vector<32x128xf32>
    %244 = arith.addf %241, %243 : vector<32x128xf32>
    %245 = vector.broadcast %35 : f32 to vector<32x128xf32>
    %246 = arith.mulf %119, %245 : vector<32x128xf32>
    %247 = arith.addf %244, %246 : vector<32x128xf32>
    %248 = vector.broadcast %43 : f32 to vector<32x128xf32>
    %249 = arith.mulf %125, %248 : vector<32x128xf32>
    %250 = arith.addf %247, %249 : vector<32x128xf32>
    %251 = vector.broadcast %51 : f32 to vector<32x128xf32>
    %252 = arith.mulf %131, %251 : vector<32x128xf32>
    %253 = arith.addf %250, %252 : vector<32x128xf32>
    %254 = vector.broadcast %59 : f32 to vector<32x128xf32>
    %255 = arith.mulf %137, %254 : vector<32x128xf32>
    %256 = arith.addf %253, %255 : vector<32x128xf32>
    %257 = vector.broadcast %67 : f32 to vector<32x128xf32>
    %258 = arith.mulf %143, %257 : vector<32x128xf32>
    %259 = arith.addf %256, %258 : vector<32x128xf32>
    %260 = vector.broadcast %75 : f32 to vector<32x128xf32>
    %261 = arith.mulf %149, %260 : vector<32x128xf32>
    %262 = arith.addf %259, %261 : vector<32x128xf32>
    %263 = vector.broadcast %83 : f32 to vector<32x128xf32>
    %264 = arith.addf %262, %263 : vector<32x128xf32>
    %cst_11 = arith.constant 0.000000e+00 : f32
    %265 = vector.broadcast %cst_11 : f32 to vector<32x128xf32>
    %266 = arith.maximumf %264, %265 : vector<32x128xf32>
    %267 = vector.broadcast %91 : f32 to vector<32x128xf32>
    %268 = arith.mulf %266, %267 : vector<32x128xf32>
    %269 = arith.addf %239, %268 : vector<32x128xf32>
    %270 = vector.broadcast %20 : f32 to vector<32x128xf32>
    %271 = arith.mulf %107, %270 : vector<32x128xf32>
    %272 = vector.broadcast %28 : f32 to vector<32x128xf32>
    %273 = arith.mulf %113, %272 : vector<32x128xf32>
    %274 = arith.addf %271, %273 : vector<32x128xf32>
    %275 = vector.broadcast %36 : f32 to vector<32x128xf32>
    %276 = arith.mulf %119, %275 : vector<32x128xf32>
    %277 = arith.addf %274, %276 : vector<32x128xf32>
    %278 = vector.broadcast %44 : f32 to vector<32x128xf32>
    %279 = arith.mulf %125, %278 : vector<32x128xf32>
    %280 = arith.addf %277, %279 : vector<32x128xf32>
    %281 = vector.broadcast %52 : f32 to vector<32x128xf32>
    %282 = arith.mulf %131, %281 : vector<32x128xf32>
    %283 = arith.addf %280, %282 : vector<32x128xf32>
    %284 = vector.broadcast %60 : f32 to vector<32x128xf32>
    %285 = arith.mulf %137, %284 : vector<32x128xf32>
    %286 = arith.addf %283, %285 : vector<32x128xf32>
    %287 = vector.broadcast %68 : f32 to vector<32x128xf32>
    %288 = arith.mulf %143, %287 : vector<32x128xf32>
    %289 = arith.addf %286, %288 : vector<32x128xf32>
    %290 = vector.broadcast %76 : f32 to vector<32x128xf32>
    %291 = arith.mulf %149, %290 : vector<32x128xf32>
    %292 = arith.addf %289, %291 : vector<32x128xf32>
    %293 = vector.broadcast %84 : f32 to vector<32x128xf32>
    %294 = arith.addf %292, %293 : vector<32x128xf32>
    %cst_12 = arith.constant 0.000000e+00 : f32
    %295 = vector.broadcast %cst_12 : f32 to vector<32x128xf32>
    %296 = arith.maximumf %294, %295 : vector<32x128xf32>
    %297 = vector.broadcast %92 : f32 to vector<32x128xf32>
    %298 = arith.mulf %296, %297 : vector<32x128xf32>
    %299 = arith.addf %269, %298 : vector<32x128xf32>
    %300 = vector.broadcast %21 : f32 to vector<32x128xf32>
    %301 = arith.mulf %107, %300 : vector<32x128xf32>
    %302 = vector.broadcast %29 : f32 to vector<32x128xf32>
    %303 = arith.mulf %113, %302 : vector<32x128xf32>
    %304 = arith.addf %301, %303 : vector<32x128xf32>
    %305 = vector.broadcast %37 : f32 to vector<32x128xf32>
    %306 = arith.mulf %119, %305 : vector<32x128xf32>
    %307 = arith.addf %304, %306 : vector<32x128xf32>
    %308 = vector.broadcast %45 : f32 to vector<32x128xf32>
    %309 = arith.mulf %125, %308 : vector<32x128xf32>
    %310 = arith.addf %307, %309 : vector<32x128xf32>
    %311 = vector.broadcast %53 : f32 to vector<32x128xf32>
    %312 = arith.mulf %131, %311 : vector<32x128xf32>
    %313 = arith.addf %310, %312 : vector<32x128xf32>
    %314 = vector.broadcast %61 : f32 to vector<32x128xf32>
    %315 = arith.mulf %137, %314 : vector<32x128xf32>
    %316 = arith.addf %313, %315 : vector<32x128xf32>
    %317 = vector.broadcast %69 : f32 to vector<32x128xf32>
    %318 = arith.mulf %143, %317 : vector<32x128xf32>
    %319 = arith.addf %316, %318 : vector<32x128xf32>
    %320 = vector.broadcast %77 : f32 to vector<32x128xf32>
    %321 = arith.mulf %149, %320 : vector<32x128xf32>
    %322 = arith.addf %319, %321 : vector<32x128xf32>
    %323 = vector.broadcast %85 : f32 to vector<32x128xf32>
    %324 = arith.addf %322, %323 : vector<32x128xf32>
    %cst_13 = arith.constant 0.000000e+00 : f32
    %325 = vector.broadcast %cst_13 : f32 to vector<32x128xf32>
    %326 = arith.maximumf %324, %325 : vector<32x128xf32>
    %327 = vector.broadcast %93 : f32 to vector<32x128xf32>
    %328 = arith.mulf %326, %327 : vector<32x128xf32>
    %329 = arith.addf %299, %328 : vector<32x128xf32>
    %330 = vector.broadcast %22 : f32 to vector<32x128xf32>
    %331 = arith.mulf %107, %330 : vector<32x128xf32>
    %332 = vector.broadcast %30 : f32 to vector<32x128xf32>
    %333 = arith.mulf %113, %332 : vector<32x128xf32>
    %334 = arith.addf %331, %333 : vector<32x128xf32>
    %335 = vector.broadcast %38 : f32 to vector<32x128xf32>
    %336 = arith.mulf %119, %335 : vector<32x128xf32>
    %337 = arith.addf %334, %336 : vector<32x128xf32>
    %338 = vector.broadcast %46 : f32 to vector<32x128xf32>
    %339 = arith.mulf %125, %338 : vector<32x128xf32>
    %340 = arith.addf %337, %339 : vector<32x128xf32>
    %341 = vector.broadcast %54 : f32 to vector<32x128xf32>
    %342 = arith.mulf %131, %341 : vector<32x128xf32>
    %343 = arith.addf %340, %342 : vector<32x128xf32>
    %344 = vector.broadcast %62 : f32 to vector<32x128xf32>
    %345 = arith.mulf %137, %344 : vector<32x128xf32>
    %346 = arith.addf %343, %345 : vector<32x128xf32>
    %347 = vector.broadcast %70 : f32 to vector<32x128xf32>
    %348 = arith.mulf %143, %347 : vector<32x128xf32>
    %349 = arith.addf %346, %348 : vector<32x128xf32>
    %350 = vector.broadcast %78 : f32 to vector<32x128xf32>
    %351 = arith.mulf %149, %350 : vector<32x128xf32>
    %352 = arith.addf %349, %351 : vector<32x128xf32>
    %353 = vector.broadcast %86 : f32 to vector<32x128xf32>
    %354 = arith.addf %352, %353 : vector<32x128xf32>
    %cst_14 = arith.constant 0.000000e+00 : f32
    %355 = vector.broadcast %cst_14 : f32 to vector<32x128xf32>
    %356 = arith.maximumf %354, %355 : vector<32x128xf32>
    %357 = vector.broadcast %94 : f32 to vector<32x128xf32>
    %358 = arith.mulf %356, %357 : vector<32x128xf32>
    %359 = arith.addf %329, %358 : vector<32x128xf32>
    %360 = vector.broadcast %23 : f32 to vector<32x128xf32>
    %361 = arith.mulf %107, %360 : vector<32x128xf32>
    %362 = vector.broadcast %31 : f32 to vector<32x128xf32>
    %363 = arith.mulf %113, %362 : vector<32x128xf32>
    %364 = arith.addf %361, %363 : vector<32x128xf32>
    %365 = vector.broadcast %39 : f32 to vector<32x128xf32>
    %366 = arith.mulf %119, %365 : vector<32x128xf32>
    %367 = arith.addf %364, %366 : vector<32x128xf32>
    %368 = vector.broadcast %47 : f32 to vector<32x128xf32>
    %369 = arith.mulf %125, %368 : vector<32x128xf32>
    %370 = arith.addf %367, %369 : vector<32x128xf32>
    %371 = vector.broadcast %55 : f32 to vector<32x128xf32>
    %372 = arith.mulf %131, %371 : vector<32x128xf32>
    %373 = arith.addf %370, %372 : vector<32x128xf32>
    %374 = vector.broadcast %63 : f32 to vector<32x128xf32>
    %375 = arith.mulf %137, %374 : vector<32x128xf32>
    %376 = arith.addf %373, %375 : vector<32x128xf32>
    %377 = vector.broadcast %71 : f32 to vector<32x128xf32>
    %378 = arith.mulf %143, %377 : vector<32x128xf32>
    %379 = arith.addf %376, %378 : vector<32x128xf32>
    %380 = vector.broadcast %79 : f32 to vector<32x128xf32>
    %381 = arith.mulf %149, %380 : vector<32x128xf32>
    %382 = arith.addf %379, %381 : vector<32x128xf32>
    %383 = vector.broadcast %87 : f32 to vector<32x128xf32>
    %384 = arith.addf %382, %383 : vector<32x128xf32>
    %cst_15 = arith.constant 0.000000e+00 : f32
    %385 = vector.broadcast %cst_15 : f32 to vector<32x128xf32>
    %386 = arith.maximumf %384, %385 : vector<32x128xf32>
    %387 = vector.broadcast %95 : f32 to vector<32x128xf32>
    %388 = arith.mulf %386, %387 : vector<32x128xf32>
    %389 = arith.addf %359, %388 : vector<32x128xf32>
    %390 = arith.index_cast %99 : i32 to index
    %c0_16 = arith.constant 0 : index
    %391 = vector.load %arg3[%390, %c0_16] : memref<32x128xf32, #tpu.memory_space<vmem>>, vector<32x128xf32>
    tpu.vector_store %arg3[%390, %c0_16], %389 {strides = array<i32>} : memref<32x128xf32, #tpu.memory_space<vmem>>, vector<32x128xf32>,
    %c1_i32 = arith.constant 1 : i32
    return
  }
  func.func @transform_0(%arg0: i32) -> (i32, i32) {
    %c0_i32 = arith.constant 0 : i32
    %c0_i32_0 = arith.constant 0 : i32
    return %arg0, %c0_i32 : i32, i32
  }
  func.func @transform_1(%arg0: i32) -> i32 {
    %c0_i32 = arith.constant 0 : i32
    %c0_i32_0 = arith.constant 0 : i32
    return %c0_i32 : i32
  }
  func.func @transform_2(%arg0: i32) -> (i32, i32) {
    %c0_i32 = arith.constant 0 : i32
    %c0_i32_0 = arith.constant 0 : i32
    return %arg0, %c0_i32 : i32, i32
  }
}

</mosaic_0001>

<llo_original>
// kernel: simple_regressor.1
$region0: #{simple_regressor.1}
  #allocation0 [shape = 'u32[]', space=smem, size = 0x4, offset = 0x4, fixed_abs, tag = 'smem constant byte address 0x4 - core index']
  #allocation1 [shape = 'u32[144,128]{1,0:T(1,128)}', space=vmem, size = 0x12000, scoped, tag = 'internal scratch']
  %s0 = inlined_call_operand.vmem [shape: f32[32,128], index: 0, kind: input, shape index: {}]
  %s1 = inlined_call_operand.vmem [shape: f32[97], index: 1, kind: input, shape index: {}]
  %s2 = inlined_call_operand.vmem [shape: f32[32,128], index: 2, kind: output, shape index: {}]
  %s3 = sld [smem:[#allocation0]]
  $region22: #{simple_regressor.1} parent=0
    _
  %s5 = ssub.s32 1, %s3
  %s6 = scalar_select 0, %s5, %s3
  $region1: #{simple_regressor.1} parent=0
    #allocation2 [shape = 'u8[512]{0}', space=smem, size = 0x200, scoped, tag = 'input window, operand 1, single buffered']
    #allocation3 [shape = 's32[1]{0}', space=sflag, size = 0x4, scoped, tag = 'scoped memory for simple_regressor.1']
    %7 = vsyncpa [#allocation3], 0
    // Predicated region
    $region2: #{simple_regressor.1} parent=1 // pred_check
      _
    $region3: #{simple_regressor.1} parent=1 // pred_check_branch
      %9 = sbr.rel (0) target = $region5
    $region4: #{simple_regressor.1} parent=1 // pred_region
      _
    $region5: #{simple_regressor.1} parent=1 // pred_fallthru
      _
    // Predicated region
    $region6: #{simple_regressor.1} parent=1 // pred_check
      _
    $region7: #{simple_regressor.1} parent=1 // pred_check_branch
      %11 = sbr.rel (0) target = $region9
    $region8: #{simple_regressor.1} parent=1 // pred_region
      %s13 = ssub.s32 16, 16
      %14 = vsyncadd [#allocation3], %s13
      %s16 = sshll.u32 %s1, 4
      %s17 = int_to_ptr.vmem [resolvable:$true] %s16
      %19 = dma.vmem_to_smem %s17, 16, [#allocation2], [#allocation3]
    $region9: #{simple_regressor.1} parent=1 // pred_fallthru
      _
    // Predicated region
    $region10: #{simple_regressor.1} parent=1 // pred_check
      _
    $region11: #{simple_regressor.1} parent=1 // pred_check_branch
      %21 = sbr.rel (0) target = $region13
    $region12: #{simple_regressor.1} parent=1 // pred_region
      %22 = dma.done [#allocation3], 16
    $region13: #{simple_regressor.1} parent=1 // pred_fallthru
      _
    %23 = sfence
    %s24 = sld [smem:[#allocation2]]
    %s25 = sld [smem:[#allocation2 + $0x1]]
    %s26 = sld [smem:[#allocation2 + $0x2]]
    %s27 = sld [smem:[#allocation2 + $0x3]]
    %s28 = sld [smem:[#allocation2 + $0x4]]
    %s29 = sld [smem:[#allocation2 + $0x5]]
    %s30 = sld [smem:[#allocation2 + $0x6]]
    %s31 = sld [smem:[#allocation2 + $0x7]]
    %s32 = sld [smem:[#allocation2 + $0x8]]
    %s33 = sld [smem:[#allocation2 + $0x9]]
    %s34 = sld [smem:[#allocation2 + $0xa]]
    %s35 = sld [smem:[#allocation2 + $0xb]]
    %s36 = sld [smem:[#allocation2 + $0xc]]
    %s37 = sld [smem:[#allocation2 + $0xd]]
    %s38 = sld [smem:[#allocation2 + $0xe]]
    %s39 = sld [smem:[#allocation2 + $0xf]]
    %s40 = sld [smem:[#allocation2 + $0x10]]
    %s41 = sld [smem:[#allocation2 + $0x11]]
    %s42 = sld [smem:[#allocation2 + $0x12]]
    %s43 = sld [smem:[#allocation2 + $0x13]]
    %s44 = sld [smem:[#allocation2 + $0x14]]
    %s45 = sld [smem:[#allocation2 + $0x15]]
    %s46 = sld [smem:[#allocation2 + $0x16]]
    %s47 = sld [smem:[#allocation2 + $0x17]]
    %s48 = sld [smem:[#allocation2 + $0x18]]
    %s49 = sld [smem:[#allocation2 + $0x19]]
    %s50 = sld [smem:[#allocation2 + $0x1a]]
    %s51 = sld [smem:[#allocation2 + $0x1b]]
    %s52 = sld [smem:[#allocation2 + $0x1c]]
    %s53 = sld [smem:[#allocation2 + $0x1d]]
    %s54 = sld [smem:[#allocation2 + $0x1e]]
    %s55 = sld [smem:[#allocation2 + $0x1f]]
    %s56 = sld [smem:[#allocation2 + $0x20]]
    %s57 = sld [smem:[#allocation2 + $0x21]]
    %s58 = sld [smem:[#allocation2 + $0x22]]
    %s59 = sld [smem:[#allocation2 + $0x23]]
    %s60 = sld [smem:[#allocation2 + $0x24]]
    %s61 = sld [smem:[#allocation2 + $0x25]]
    %s62 = sld [smem:[#allocation2 + $0x26]]
    %s63 = sld [smem:[#allocation2 + $0x27]]
    %s64 = sld [smem:[#allocation2 + $0x28]]
    %s65 = sld [smem:[#allocation2 + $0x29]]
    %s66 = sld [smem:[#allocation2 + $0x2a]]
    %s67 = sld [smem:[#allocation2 + $0x2b]]
    %s68 = sld [smem:[#allocation2 + $0x2c]]
    %s69 = sld [smem:[#allocation2 + $0x2d]]
    %s70 = sld [smem:[#allocation2 + $0x2e]]
    %s71 = sld [smem:[#allocation2 + $0x2f]]
    %s72 = sld [smem:[#allocation2 + $0x30]]
    %s73 = sld [smem:[#allocation2 + $0x31]]
    %s74 = sld [smem:[#allocation2 + $0x32]]
    %s75 = sld [smem:[#allocation2 + $0x33]]
    %s76 = sld [smem:[#allocation2 + $0x34]]
    %s77 = sld [smem:[#allocation2 + $0x35]]
    %s78 = sld [smem:[#allocation2 + $0x36]]
    %s79 = sld [smem:[#allocation2 + $0x37]]
    %s80 = sld [smem:[#allocation2 + $0x38]]
    %s81 = sld [smem:[#allocation2 + $0x39]]
    %s82 = sld [smem:[#allocation2 + $0x3a]]
    %s83 = sld [smem:[#allocation2 + $0x3b]]
    %s84 = sld [smem:[#allocation2 + $0x3c]]
    %s85 = sld [smem:[#allocation2 + $0x3d]]
    %s86 = sld [smem:[#allocation2 + $0x3e]]
    %s87 = sld [smem:[#allocation2 + $0x3f]]
    %s88 = sld [smem:[#allocation2 + $0x40]]
    %s89 = sld [smem:[#allocation2 + $0x41]]
    %s90 = sld [smem:[#allocation2 + $0x42]]
    %s91 = sld [smem:[#allocation2 + $0x43]]
    %s92 = sld [smem:[#allocation2 + $0x44]]
    %s93 = sld [smem:[#allocation2 + $0x45]]
    %s94 = sld [smem:[#allocation2 + $0x46]]
    %s95 = sld [smem:[#allocation2 + $0x47]]
    %s96 = sld [smem:[#allocation2 + $0x48]]
    %s97 = sld [smem:[#allocation2 + $0x49]]
    %s98 = sld [smem:[#allocation2 + $0x4a]]
    %s99 = sld [smem:[#allocation2 + $0x4b]]
    %s100 = sld [smem:[#allocation2 + $0x4c]]
    %s101 = sld [smem:[#allocation2 + $0x4d]]
    %s102 = sld [smem:[#allocation2 + $0x4e]]
    %s103 = sld [smem:[#allocation2 + $0x4f]]
    %s104 = sld [smem:[#allocation2 + $0x50]]
    %s105 = sld [smem:[#allocation2 + $0x51]]
    %s106 = sld [smem:[#allocation2 + $0x52]]
    %s107 = sld [smem:[#allocation2 + $0x53]]
    %s108 = sld [smem:[#allocation2 + $0x54]]
    %s109 = sld [smem:[#allocation2 + $0x55]]
    %s110 = sld [smem:[#allocation2 + $0x56]]
    %s111 = sld [smem:[#allocation2 + $0x57]]
    %s112 = sld [smem:[#allocation2 + $0x58]]
    %s113 = sld [smem:[#allocation2 + $0x59]]
    %s114 = sld [smem:[#allocation2 + $0x5a]]
    %s115 = sld [smem:[#allocation2 + $0x5b]]
    %s116 = sld [smem:[#allocation2 + $0x5c]]
    %s117 = sld [smem:[#allocation2 + $0x5d]]
    %s118 = sld [smem:[#allocation2 + $0x5e]]
    %s119 = sld [smem:[#allocation2 + $0x5f]]
    %s120 = sld [smem:[#allocation2 + $0x60]]
    %v121 = vstv %s120
    %v122 = vld [vmem:[%s0] sm:$0xff]
    %v123 = vld [vmem:[%s0 + $0x8] sm:$0xff]
    %v124 = vld [vmem:[%s0 + $0x10] sm:$0xff]
    %v125 = vld [vmem:[%s0 + $0x18] sm:$0xff]
    %v126 = vstv %s24
    %v127 = vmul.f32 %v122, %v126
    %v128 = vmul.f32 %v123, %v126
    %v129 = vmul.f32 %v124, %v126
    %v130 = vmul.f32 %v125, %v126
    %v131 = vstv %s32
    %v132 = vadd.f32 %v127, %v131
    %v133 = vadd.f32 %v128, %v131
    %v134 = vadd.f32 %v129, %v131
    %v135 = vadd.f32 %v130, %v131
    %v136 = vmax.f32 %v132, 0.0
    %v137 = vmax.f32 %v133, 0.0
    %v138 = vmax.f32 %v134, 0.0
    %v139 = vmax.f32 %v135, 0.0
    %v140 = vstv %s25
    %v141 = vmul.f32 %v122, %v140
    %v142 = vmul.f32 %v123, %v140
    %v143 = vmul.f32 %v124, %v140
    %v144 = vmul.f32 %v125, %v140
    %v145 = vstv %s33
    %v146 = vadd.f32 %v141, %v145
    %v147 = vadd.f32 %v142, %v145
    %v148 = vadd.f32 %v143, %v145
    %v149 = vadd.f32 %v144, %v145
    %v150 = vmax.f32 %v146, 0.0
    %v151 = vmax.f32 %v147, 0.0
    %v152 = vmax.f32 %v148, 0.0
    %v153 = vmax.f32 %v149, 0.0
    %v154 = vstv %s26
    %v155 = vmul.f32 %v122, %v154
    %v156 = vmul.f32 %v123, %v154
    %v157 = vmul.f32 %v124, %v154
    %v158 = vmul.f32 %v125, %v154
    %v159 = vstv %s34
    %v160 = vadd.f32 %v155, %v159
    %v161 = vadd.f32 %v156, %v159
    %v162 = vadd.f32 %v157, %v159
    %v163 = vadd.f32 %v158, %v159
    %v164 = vmax.f32 %v160, 0.0
    %v165 = vmax.f32 %v161, 0.0
    %v166 = vmax.f32 %v162, 0.0
    %v167 = vmax.f32 %v163, 0.0
    %v168 = vstv %s27
    %v169 = vmul.f32 %v122, %v168
    %v170 = vmul.f32 %v123, %v168
    %v171 = vmul.f32 %v124, %v168
    %v172 = vmul.f32 %v125, %v168
    %v173 = vstv %s35
    %v174 = vadd.f32 %v169, %v173
    %v175 = vadd.f32 %v170, %v173
    %v176 = vadd.f32 %v171, %v173
    %v177 = vadd.f32 %v172, %v173
    %v178 = vmax.f32 %v174, 0.0
    %v179 = vmax.f32 %v175, 0.0
    %v180 = vmax.f32 %v176, 0.0
    %v181 = vmax.f32 %v177, 0.0
    %v182 = vstv %s28
    %v183 = vmul.f32 %v122, %v182
    %v184 = vmul.f32 %v123, %v182
    %v185 = vmul.f32 %v124, %v182
    %v186 = vmul.f32 %v125, %v182
    %v187 = vstv %s36
    %v188 = vadd.f32 %v183, %v187
    %v189 = vadd.f32 %v184, %v187
    %v190 = vadd.f32 %v185, %v187
    %v191 = vadd.f32 %v186, %v187
    %v192 = vmax.f32 %v188, 0.0
    %v193 = vmax.f32 %v189, 0.0
    %v194 = vmax.f32 %v190, 0.0
    %v195 = vmax.f32 %v191, 0.0
    %v196 = vstv %s29
    %v197 = vmul.f32 %v122, %v196
    %v198 = vmul.f32 %v123, %v196
    %v199 = vmul.f32 %v124, %v196
    %v200 = vmul.f32 %v125, %v196
    %v201 = vstv %s37
    %v202 = vadd.f32 %v197, %v201
    %v203 = vadd.f32 %v198, %v201
    %v204 = vadd.f32 %v199, %v201
    %v205 = vadd.f32 %v200, %v201
    %v206 = vmax.f32 %v202, 0.0
    %v207 = vmax.f32 %v203, 0.0
    %v208 = vmax.f32 %v204, 0.0
    %v209 = vmax.f32 %v205, 0.0
    %v210 = vstv %s30
    %v211 = vmul.f32 %v122, %v210
    %v212 = vmul.f32 %v123, %v210
    %v213 = vmul.f32 %v124, %v210
    %v214 = vmul.f32 %v125, %v210
    %v215 = vstv %s38
    %v216 = vadd.f32 %v211, %v215
    %v217 = vadd.f32 %v212, %v215
    %v218 = vadd.f32 %v213, %v215
    %v219 = vadd.f32 %v214, %v215
    %v220 = vmax.f32 %v216, 0.0
    %v221 = vmax.f32 %v217, 0.0
    %v222 = vmax.f32 %v218, 0.0
    %v223 = vmax.f32 %v219, 0.0
    %v224 = vstv %s31
    %v225 = vmul.f32 %v122, %v224
    %v226 = vmul.f32 %v123, %v224
    %v227 = vmul.f32 %v124, %v224
    %v228 = vmul.f32 %v125, %v224
    %v229 = vstv %s39
    %v230 = vadd.f32 %v225, %v229
    %v231 = vadd.f32 %v226, %v229
    %v232 = vadd.f32 %v227, %v229
    %v233 = vadd.f32 %v228, %v229
    %v234 = vmax.f32 %v230, 0.0
    %v235 = vmax.f32 %v231, 0.0
    %v236 = vmax.f32 %v232, 0.0
    %v237 = vmax.f32 %v233, 0.0
    %v238 = vstv %s40
    %v239 = vmul.f32 %v136, %v238
    %v240 = vmul.f32 %v137, %v238
    %v241 = vmul.f32 %v138, %v238
    %v242 = vmul.f32 %v139, %v238
    %v243 = vstv %s48
    %v244 = vmul.f32 %v150, %v243
    %v245 = vmul.f32 %v151, %v243
    %v246 = vmul.f32 %v152, %v243
    %v247 = vmul.f32 %v153, %v243
    %v248 = vadd.f32 %v239, %v244
    %v249 = vadd.f32 %v240, %v245
    %v250 = vadd.f32 %v241, %v246
    %v251 = vadd.f32 %v242, %v247
    %v252 = vstv %s56
    %v253 = vmul.f32 %v164, %v252
    %v254 = vmul.f32 %v165, %v252
    %v255 = vmul.f32 %v166, %v252
    %v256 = vmul.f32 %v167, %v252
    %v257 = vadd.f32 %v248, %v253
    %v258 = vadd.f32 %v249, %v254
    %v259 = vadd.f32 %v250, %v255
    %v260 = vadd.f32 %v251, %v256
    %v261 = vstv %s64
    %v262 = vmul.f32 %v178, %v261
    %v263 = vmul.f32 %v179, %v261
    %v264 = vmul.f32 %v180, %v261
    %v265 = vmul.f32 %v181, %v261
    %v266 = vadd.f32 %v257, %v262
    %v267 = vadd.f32 %v258, %v263
    %v268 = vadd.f32 %v259, %v264
    %v269 = vadd.f32 %v260, %v265
    %v270 = vstv %s72
    %v271 = vmul.f32 %v192, %v270
    %v272 = vmul.f32 %v193, %v270
    %v273 = vmul.f32 %v194, %v270
    %v274 = vmul.f32 %v195, %v270
    %v275 = vadd.f32 %v266, %v271
    %v276 = vadd.f32 %v267, %v272
    %v277 = vadd.f32 %v268, %v273
    %v278 = vadd.f32 %v269, %v274
    %v279 = vstv %s80
    %v280 = vmul.f32 %v206, %v279
    %v281 = vmul.f32 %v207, %v279
    %v282 = vmul.f32 %v208, %v279
    %v283 = vmul.f32 %v209, %v279
    %v284 = vadd.f32 %v275, %v280
    %v285 = vadd.f32 %v276, %v281
    %v286 = vadd.f32 %v277, %v282
    %v287 = vadd.f32 %v278, %v283
    %v288 = vstv %s88
    %v289 = vmul.f32 %v220, %v288
    %v290 = vmul.f32 %v221, %v288
    %v291 = vmul.f32 %v222, %v288
    %v292 = vmul.f32 %v223, %v288
    %v293 = vadd.f32 %v284, %v289
    %v294 = vadd.f32 %v285, %v290
    %v295 = vadd.f32 %v286, %v291
    %v296 = vadd.f32 %v287, %v292
    %v297 = vstv %s96
    %v298 = vmul.f32 %v234, %v297
    %v299 = vmul.f32 %v235, %v297
    %v300 = vmul.f32 %v236, %v297
    %v301 = vmul.f32 %v237, %v297
    %v302 = vadd.f32 %v293, %v298
    %v303 = vadd.f32 %v294, %v299
    %v304 = vadd.f32 %v295, %v300
    %v305 = vadd.f32 %v296, %v301
    %v306 = vstv %s104
    %v307 = vadd.f32 %v302, %v306
    %v308 = vadd.f32 %v303, %v306
    %v309 = vadd.f32 %v304, %v306
    %v310 = vadd.f32 %v305, %v306
    %v311 = vmax.f32 %v307, 0.0
    %v312 = vmax.f32 %v308, 0.0
    %v313 = vmax.f32 %v309, 0.0
    %v314 = vmax.f32 %v310, 0.0
    %v315 = vstv %s112
    %v316 = vmul.f32 %v311, %v315
    %v317 = vmul.f32 %v312, %v315
    %v318 = vmul.f32 %v313, %v315
    %v319 = vmul.f32 %v314, %v315
    %v320 = vadd.f32 %v121, %v316
    %v321 = vadd.f32 %v121, %v317
    %v322 = vadd.f32 %v121, %v318
    %v323 = vadd.f32 %v121, %v319
    %v324 = vstv %s41
    %v325 = vmul.f32 %v136, %v324
    %v326 = vmul.f32 %v137, %v324
    %v327 = vmul.f32 %v138, %v324
    %v328 = vmul.f32 %v139, %v324
    %v329 = vstv %s49
    %v330 = vmul.f32 %v150, %v329
    %v331 = vmul.f32 %v151, %v329
    %v332 = vmul.f32 %v152, %v329
    %v333 = vmul.f32 %v153, %v329
    %v334 = vadd.f32 %v325, %v330
    %v335 = vadd.f32 %v326, %v331
    %v336 = vadd.f32 %v327, %v332
    %v337 = vadd.f32 %v328, %v333
    %v338 = vstv %s57
    %v339 = vmul.f32 %v164, %v338
    %v340 = vmul.f32 %v165, %v338
    %v341 = vmul.f32 %v166, %v338
    %v342 = vmul.f32 %v167, %v338
    %v343 = vadd.f32 %v334, %v339
    %v344 = vadd.f32 %v335, %v340
    %v345 = vadd.f32 %v336, %v341
    %v346 = vadd.f32 %v337, %v342
    %v347 = vstv %s65
    %v348 = vmul.f32 %v178, %v347
    %v349 = vmul.f32 %v179, %v347
    %v350 = vmul.f32 %v180, %v347
    %v351 = vmul.f32 %v181, %v347
    %v352 = vadd.f32 %v343, %v348
    %v353 = vadd.f32 %v344, %v349
    %v354 = vadd.f32 %v345, %v350
    %v355 = vadd.f32 %v346, %v351
    %v356 = vstv %s73
    %v357 = vmul.f32 %v192, %v356
    %v358 = vmul.f32 %v193, %v356
    %v359 = vmul.f32 %v194, %v356
    %v360 = vmul.f32 %v195, %v356
    %v361 = vadd.f32 %v352, %v357
    %v362 = vadd.f32 %v353, %v358
    %v363 = vadd.f32 %v354, %v359
    %v364 = vadd.f32 %v355, %v360
    %v365 = vstv %s81
    %v366 = vmul.f32 %v206, %v365
    %v367 = vmul.f32 %v207, %v365
    %v368 = vmul.f32 %v208, %v365
    %v369 = vmul.f32 %v209, %v365
    %v370 = vadd.f32 %v361, %v366
    %v371 = vadd.f32 %v362, %v367
    %v372 = vadd.f32 %v363, %v368
    %v373 = vadd.f32 %v364, %v369
    %v374 = vstv %s89
    %v375 = vmul.f32 %v220, %v374
    %v376 = vmul.f32 %v221, %v374
    %v377 = vmul.f32 %v222, %v374
    %v378 = vmul.f32 %v223, %v374
    %v379 = vadd.f32 %v370, %v375
    %v380 = vadd.f32 %v371, %v376
    %v381 = vadd.f32 %v372, %v377
    %v382 = vadd.f32 %v373, %v378
    %v383 = vstv %s97
    %v384 = vmul.f32 %v234, %v383
    %v385 = vmul.f32 %v235, %v383
    %v386 = vmul.f32 %v236, %v383
    %v387 = vmul.f32 %v237, %v383
    %v388 = vadd.f32 %v379, %v384
    %v389 = vadd.f32 %v380, %v385
    %v390 = vadd.f32 %v381, %v386
    %v391 = vadd.f32 %v382, %v387
    %v392 = vstv %s105
    %v393 = vadd.f32 %v388, %v392
    %v394 = vadd.f32 %v389, %v392
    %v395 = vadd.f32 %v390, %v392
    %v396 = vadd.f32 %v391, %v392
    %v397 = vmax.f32 %v393, 0.0
    %v398 = vmax.f32 %v394, 0.0
    %v399 = vmax.f32 %v395, 0.0
    %v400 = vmax.f32 %v396, 0.0
    %v401 = vstv %s113
    %v402 = vmul.f32 %v397, %v401
    %v403 = vmul.f32 %v398, %v401
    %v404 = vmul.f32 %v399, %v401
    %v405 = vmul.f32 %v400, %v401
    %v406 = vadd.f32 %v320, %v402
    %v407 = vadd.f32 %v321, %v403
    %v408 = vadd.f32 %v322, %v404
    %v409 = vadd.f32 %v323, %v405
    %v410 = vstv %s42
    %v411 = vmul.f32 %v136, %v410
    %v412 = vmul.f32 %v137, %v410
    %v413 = vmul.f32 %v138, %v410
    %v414 = vmul.f32 %v139, %v410
    %v415 = vstv %s50
    %v416 = vmul.f32 %v150, %v415
    %v417 = vmul.f32 %v151, %v415
    %v418 = vmul.f32 %v152, %v415
    %v419 = vmul.f32 %v153, %v415
    %v420 = vadd.f32 %v411, %v416
    %v421 = vadd.f32 %v412, %v417
    %v422 = vadd.f32 %v413, %v418
    %v423 = vadd.f32 %v414, %v419
    %v424 = vstv %s58
    %v425 = vmul.f32 %v164, %v424
    %v426 = vmul.f32 %v165, %v424
    %v427 = vmul.f32 %v166, %v424
    %v428 = vmul.f32 %v167, %v424
    %v429 = vadd.f32 %v420, %v425
    %v430 = vadd.f32 %v421, %v426
    %v431 = vadd.f32 %v422, %v427
    %v432 = vadd.f32 %v423, %v428
    %v433 = vstv %s66
    %v434 = vmul.f32 %v178, %v433
    %v435 = vmul.f32 %v179, %v433
    %v436 = vmul.f32 %v180, %v433
    %v437 = vmul.f32 %v181, %v433
    %v438 = vadd.f32 %v429, %v434
    %v439 = vadd.f32 %v430, %v435
    %v440 = vadd.f32 %v431, %v436
    %v441 = vadd.f32 %v432, %v437
    %v442 = vstv %s74
    %v443 = vmul.f32 %v192, %v442
    %v444 = vmul.f32 %v193, %v442
    %v445 = vmul.f32 %v194, %v442
    %v446 = vmul.f32 %v195, %v442
    %v447 = vadd.f32 %v438, %v443
    %v448 = vadd.f32 %v439, %v444
    %v449 = vadd.f32 %v440, %v445
    %v450 = vadd.f32 %v441, %v446
    %v451 = vstv %s82
    %v452 = vmul.f32 %v206, %v451
    %v453 = vmul.f32 %v207, %v451
    %v454 = vmul.f32 %v208, %v451
    %v455 = vmul.f32 %v209, %v451
    %v456 = vadd.f32 %v447, %v452
    %v457 = vadd.f32 %v448, %v453
    %v458 = vadd.f32 %v449, %v454
    %v459 = vadd.f32 %v450, %v455
    %v460 = vstv %s90
    %v461 = vmul.f32 %v220, %v460
    %v462 = vmul.f32 %v221, %v460
    %v463 = vmul.f32 %v222, %v460
    %v464 = vmul.f32 %v223, %v460
    %v465 = vadd.f32 %v456, %v461
    %v466 = vadd.f32 %v457, %v462
    %v467 = vadd.f32 %v458, %v463
    %v468 = vadd.f32 %v459, %v464
    %v469 = vstv %s98
    %v470 = vmul.f32 %v234, %v469
    %v471 = vmul.f32 %v235, %v469
    %v472 = vmul.f32 %v236, %v469
    %v473 = vmul.f32 %v237, %v469
    %v474 = vadd.f32 %v465, %v470
    %v475 = vadd.f32 %v466, %v471
    %v476 = vadd.f32 %v467, %v472
    %v477 = vadd.f32 %v468, %v473
    %v478 = vstv %s106
    %v479 = vadd.f32 %v474, %v478
    %v480 = vadd.f32 %v475, %v478
    %v481 = vadd.f32 %v476, %v478
    %v482 = vadd.f32 %v477, %v478
    %v483 = vmax.f32 %v479, 0.0
    %v484 = vmax.f32 %v480, 0.0
    %v485 = vmax.f32 %v481, 0.0
    %v486 = vmax.f32 %v482, 0.0
    %v487 = vstv %s114
    %v488 = vmul.f32 %v483, %v487
    %v489 = vmul.f32 %v484, %v487
    %v490 = vmul.f32 %v485, %v487
    %v491 = vmul.f32 %v486, %v487
    %v492 = vadd.f32 %v406, %v488
    %v493 = vadd.f32 %v407, %v489
    %v494 = vadd.f32 %v408, %v490
    %v495 = vadd.f32 %v409, %v491
    %v496 = vstv %s43
    %v497 = vmul.f32 %v136, %v496
    %v498 = vmul.f32 %v137, %v496
    %v499 = vmul.f32 %v138, %v496
    %v500 = vmul.f32 %v139, %v496
    %v501 = vstv %s51
    %v502 = vmul.f32 %v150, %v501
    %v503 = vmul.f32 %v151, %v501
    %v504 = vmul.f32 %v152, %v501
    %v505 = vmul.f32 %v153, %v501
    %v506 = vadd.f32 %v497, %v502
    %v507 = vadd.f32 %v498, %v503
    %v508 = vadd.f32 %v499, %v504
    %v509 = vadd.f32 %v500, %v505
    %v510 = vstv %s59
    %v511 = vmul.f32 %v164, %v510
    %v512 = vmul.f32 %v165, %v510
    %v513 = vmul.f32 %v166, %v510
    %v514 = vmul.f32 %v167, %v510
    %v515 = vadd.f32 %v506, %v511
    %v516 = vadd.f32 %v507, %v512
    %v517 = vadd.f32 %v508, %v513
    %v518 = vadd.f32 %v509, %v514
    %v519 = vstv %s67
    %v520 = vmul.f32 %v178, %v519
    %v521 = vmul.f32 %v179, %v519
    %v522 = vmul.f32 %v180, %v519
    %v523 = vmul.f32 %v181, %v519
    %v524 = vadd.f32 %v515, %v520
    %v525 = vadd.f32 %v516, %v521
    %v526 = vadd.f32 %v517, %v522
    %v527 = vadd.f32 %v518, %v523
    %v528 = vstv %s75
    %v529 = vmul.f32 %v192, %v528
    %v530 = vmul.f32 %v193, %v528
    %v531 = vmul.f32 %v194, %v528
    %v532 = vmul.f32 %v195, %v528
    %v533 = vadd.f32 %v524, %v529
    %v534 = vadd.f32 %v525, %v530
    %v535 = vadd.f32 %v526, %v531
    %v536 = vadd.f32 %v527, %v532
    %v537 = vstv %s83
    %v538 = vmul.f32 %v206, %v537
    %v539 = vmul.f32 %v207, %v537
    %v540 = vmul.f32 %v208, %v537
    %v541 = vmul.f32 %v209, %v537
    %v542 = vadd.f32 %v533, %v538
    %v543 = vadd.f32 %v534, %v539
    %v544 = vadd.f32 %v535, %v540
    %v545 = vadd.f32 %v536, %v541
    %v546 = vstv %s91
    %v547 = vmul.f32 %v220, %v546
    %v548 = vmul.f32 %v221, %v546
    %v549 = vmul.f32 %v222, %v546
    %v550 = vmul.f32 %v223, %v546
    %v551 = vadd.f32 %v542, %v547
    %v552 = vadd.f32 %v543, %v548
    %v553 = vadd.f32 %v544, %v549
    %v554 = vadd.f32 %v545, %v550
    %v555 = vstv %s99
    %v556 = vmul.f32 %v234, %v555
    %v557 = vmul.f32 %v235, %v555
    %v558 = vmul.f32 %v236, %v555
    %v559 = vmul.f32 %v237, %v555
    %v560 = vadd.f32 %v551, %v556
    %v561 = vadd.f32 %v552, %v557
    %v562 = vadd.f32 %v553, %v558
    %v563 = vadd.f32 %v554, %v559
    %v564 = vstv %s107
    %v565 = vadd.f32 %v560, %v564
    %v566 = vadd.f32 %v561, %v564
    %v567 = vadd.f32 %v562, %v564
    %v568 = vadd.f32 %v563, %v564
    %v569 = vmax.f32 %v565, 0.0
    %v570 = vmax.f32 %v566, 0.0
    %v571 = vmax.f32 %v567, 0.0
    %v572 = vmax.f32 %v568, 0.0
    %v573 = vstv %s115
    %v574 = vmul.f32 %v569, %v573
    %v575 = vmul.f32 %v570, %v573
    %v576 = vmul.f32 %v571, %v573
    %v577 = vmul.f32 %v572, %v573
    %v578 = vadd.f32 %v492, %v574
    %v579 = vadd.f32 %v493, %v575
    %v580 = vadd.f32 %v494, %v576
    %v581 = vadd.f32 %v495, %v577
    %v582 = vstv %s44
    %v583 = vmul.f32 %v136, %v582
    %v584 = vmul.f32 %v137, %v582
    %v585 = vmul.f32 %v138, %v582
    %v586 = vmul.f32 %v139, %v582
    %v587 = vstv %s52
    %v588 = vmul.f32 %v150, %v587
    %v589 = vmul.f32 %v151, %v587
    %v590 = vmul.f32 %v152, %v587
    %v591 = vmul.f32 %v153, %v587
    %v592 = vadd.f32 %v583, %v588
    %v593 = vadd.f32 %v584, %v589
    %v594 = vadd.f32 %v585, %v590
    %v595 = vadd.f32 %v586, %v591
    %v596 = vstv %s60
    %v597 = vmul.f32 %v164, %v596
    %v598 = vmul.f32 %v165, %v596
    %v599 = vmul.f32 %v166, %v596
    %v600 = vmul.f32 %v167, %v596
    %v601 = vadd.f32 %v592, %v597
    %v602 = vadd.f32 %v593, %v598
    %v603 = vadd.f32 %v594, %v599
    %v604 = vadd.f32 %v595, %v600
    %v605 = vstv %s68
    %v606 = vmul.f32 %v178, %v605
    %v607 = vmul.f32 %v179, %v605
    %v608 = vmul.f32 %v180, %v605
    %v609 = vmul.f32 %v181, %v605
    %v610 = vadd.f32 %v601, %v606
    %v611 = vadd.f32 %v602, %v607
    %v612 = vadd.f32 %v603, %v608
    %v613 = vadd.f32 %v604, %v609
    %v614 = vstv %s76
    %v615 = vmul.f32 %v192, %v614
    %v616 = vmul.f32 %v193, %v614
    %v617 = vmul.f32 %v194, %v614
    %v618 = vmul.f32 %v195, %v614
    %v619 = vadd.f32 %v610, %v615
    %v620 = vadd.f32 %v611, %v616
    %v621 = vadd.f32 %v612, %v617
    %v622 = vadd.f32 %v613, %v618
    %v623 = vstv %s84
    %v624 = vmul.f32 %v206, %v623
    %v625 = vmul.f32 %v207, %v623
    %v626 = vmul.f32 %v208, %v623
    %v627 = vmul.f32 %v209, %v623
    %v628 = vadd.f32 %v619, %v624
    %v629 = vadd.f32 %v620, %v625
    %v630 = vadd.f32 %v621, %v626
    %v631 = vadd.f32 %v622, %v627
    %v632 = vstv %s92
    %v633 = vmul.f32 %v220, %v632
    %v634 = vmul.f32 %v221, %v632
    %v635 = vmul.f32 %v222, %v632
    %v636 = vmul.f32 %v223, %v632
    %v637 = vadd.f32 %v628, %v633
    %v638 = vadd.f32 %v629, %v634
    %v639 = vadd.f32 %v630, %v635
    %v640 = vadd.f32 %v631, %v636
    %v641 = vstv %s100
    %v642 = vmul.f32 %v234, %v641
    %v643 = vmul.f32 %v235, %v641
    %v644 = vmul.f32 %v236, %v641
    %v645 = vmul.f32 %v237, %v641
    %v646 = vadd.f32 %v637, %v642
    %v647 = vadd.f32 %v638, %v643
    %v648 = vadd.f32 %v639, %v644
    %v649 = vadd.f32 %v640, %v645
    %v650 = vstv %s108
    %v651 = vadd.f32 %v646, %v650
    %v652 = vadd.f32 %v647, %v650
    %v653 = vadd.f32 %v648, %v650
    %v654 = vadd.f32 %v649, %v650
    %v655 = vmax.f32 %v651, 0.0
    %v656 = vmax.f32 %v652, 0.0
    %v657 = vmax.f32 %v653, 0.0
    %v658 = vmax.f32 %v654, 0.0
    %v659 = vstv %s116
    %v660 = vmul.f32 %v655, %v659
    %v661 = vmul.f32 %v656, %v659
    %v662 = vmul.f32 %v657, %v659
    %v663 = vmul.f32 %v658, %v659
    %v664 = vadd.f32 %v578, %v660
    %v665 = vadd.f32 %v579, %v661
    %v666 = vadd.f32 %v580, %v662
    %v667 = vadd.f32 %v581, %v663
    %v668 = vstv %s45
    %v669 = vmul.f32 %v136, %v668
    %v670 = vmul.f32 %v137, %v668
    %v671 = vmul.f32 %v138, %v668
    %v672 = vmul.f32 %v139, %v668
    %v673 = vstv %s53
    %v674 = vmul.f32 %v150, %v673
    %v675 = vmul.f32 %v151, %v673
    %v676 = vmul.f32 %v152, %v673
    %v677 = vmul.f32 %v153, %v673
    %v678 = vadd.f32 %v669, %v674
    %v679 = vadd.f32 %v670, %v675
    %v680 = vadd.f32 %v671, %v676
    %v681 = vadd.f32 %v672, %v677
    %v682 = vstv %s61
    %v683 = vmul.f32 %v164, %v682
    %v684 = vmul.f32 %v165, %v682
    %v685 = vmul.f32 %v166, %v682
    %v686 = vmul.f32 %v167, %v682
    %v687 = vadd.f32 %v678, %v683
    %v688 = vadd.f32 %v679, %v684
    %v689 = vadd.f32 %v680, %v685
    %v690 = vadd.f32 %v681, %v686
    %v691 = vstv %s69
    %v692 = vmul.f32 %v178, %v691
    %v693 = vmul.f32 %v179, %v691
    %v694 = vmul.f32 %v180, %v691
    %v695 = vmul.f32 %v181, %v691
    %v696 = vadd.f32 %v687, %v692
    %v697 = vadd.f32 %v688, %v693
    %v698 = vadd.f32 %v689, %v694
    %v699 = vadd.f32 %v690, %v695
    %v700 = vstv %s77
    %v701 = vmul.f32 %v192, %v700
    %v702 = vmul.f32 %v193, %v700
    %v703 = vmul.f32 %v194, %v700
    %v704 = vmul.f32 %v195, %v700
    %v705 = vadd.f32 %v696, %v701
    %v706 = vadd.f32 %v697, %v702
    %v707 = vadd.f32 %v698, %v703
    %v708 = vadd.f32 %v699, %v704
    %v709 = vstv %s85
    %v710 = vmul.f32 %v206, %v709
    %v711 = vmul.f32 %v207, %v709
    %v712 = vmul.f32 %v208, %v709
    %v713 = vmul.f32 %v209, %v709
    %v714 = vadd.f32 %v705, %v710
    %v715 = vadd.f32 %v706, %v711
    %v716 = vadd.f32 %v707, %v712
    %v717 = vadd.f32 %v708, %v713
    %v718 = vstv %s93
    %v719 = vmul.f32 %v220, %v718
    %v720 = vmul.f32 %v221, %v718
    %v721 = vmul.f32 %v222, %v718
    %v722 = vmul.f32 %v223, %v718
    %v723 = vadd.f32 %v714, %v719
    %v724 = vadd.f32 %v715, %v720
    %v725 = vadd.f32 %v716, %v721
    %v726 = vadd.f32 %v717, %v722
    %v727 = vstv %s101
    %v728 = vmul.f32 %v234, %v727
    %v729 = vmul.f32 %v235, %v727
    %v730 = vmul.f32 %v236, %v727
    %v731 = vmul.f32 %v237, %v727
    %v732 = vadd.f32 %v723, %v728
    %v733 = vadd.f32 %v724, %v729
    %v734 = vadd.f32 %v725, %v730
    %v735 = vadd.f32 %v726, %v731
    %v736 = vstv %s109
    %v737 = vadd.f32 %v732, %v736
    %v738 = vadd.f32 %v733, %v736
    %v739 = vadd.f32 %v734, %v736
    %v740 = vadd.f32 %v735, %v736
    %v741 = vmax.f32 %v737, 0.0
    %v742 = vmax.f32 %v738, 0.0
    %v743 = vmax.f32 %v739, 0.0
    %v744 = vmax.f32 %v740, 0.0
    %v745 = vstv %s117
    %v746 = vmul.f32 %v741, %v745
    %v747 = vmul.f32 %v742, %v745
    %v748 = vmul.f32 %v743, %v745
    %v749 = vmul.f32 %v744, %v745
    %v750 = vadd.f32 %v664, %v746
    %v751 = vadd.f32 %v665, %v747
    %v752 = vadd.f32 %v666, %v748
    %v753 = vadd.f32 %v667, %v749
    %v754 = vstv %s46
    %v755 = vmul.f32 %v136, %v754
    %v756 = vmul.f32 %v137, %v754
    %v757 = vmul.f32 %v138, %v754
    %v758 = vmul.f32 %v139, %v754
    %v759 = vstv %s54
    %v760 = vmul.f32 %v150, %v759
    %v761 = vmul.f32 %v151, %v759
    %v762 = vmul.f32 %v152, %v759
    %v763 = vmul.f32 %v153, %v759
    %v764 = vadd.f32 %v755, %v760
    %v765 = vadd.f32 %v756, %v761
    %v766 = vadd.f32 %v757, %v762
    %v767 = vadd.f32 %v758, %v763
    %v768 = vstv %s62
    %v769 = vmul.f32 %v164, %v768
    %v770 = vmul.f32 %v165, %v768
    %v771 = vmul.f32 %v166, %v768
    %v772 = vmul.f32 %v167, %v768
    %v773 = vadd.f32 %v764, %v769
    %v774 = vadd.f32 %v765, %v770
    %v775 = vadd.f32 %v766, %v771
    %v776 = vadd.f32 %v767, %v772
    %v777 = vstv %s70
    %v778 = vmul.f32 %v178, %v777
    %v779 = vmul.f32 %v179, %v777
    %v780 = vmul.f32 %v180, %v777
    %v781 = vmul.f32 %v181, %v777
    %v782 = vadd.f32 %v773, %v778
    %v783 = vadd.f32 %v774, %v779
    %v784 = vadd.f32 %v775, %v780
    %v785 = vadd.f32 %v776, %v781
    %v786 = vstv %s78
    %v787 = vmul.f32 %v192, %v786
    %v788 = vmul.f32 %v193, %v786
    %v789 = vmul.f32 %v194, %v786
    %v790 = vmul.f32 %v195, %v786
    %v791 = vadd.f32 %v782, %v787
    %v792 = vadd.f32 %v783, %v788
    %v793 = vadd.f32 %v784, %v789
    %v794 = vadd.f32 %v785, %v790
    %v795 = vstv %s86
    %v796 = vmul.f32 %v206, %v795
    %v797 = vmul.f32 %v207, %v795
    %v798 = vmul.f32 %v208, %v795
    %v799 = vmul.f32 %v209, %v795
    %v800 = vadd.f32 %v791, %v796
    %v801 = vadd.f32 %v792, %v797
    %v802 = vadd.f32 %v793, %v798
    %v803 = vadd.f32 %v794, %v799
    %v804 = vstv %s94
    %v805 = vmul.f32 %v220, %v804
    %v806 = vmul.f32 %v221, %v804
    %v807 = vmul.f32 %v222, %v804
    %v808 = vmul.f32 %v223, %v804
    %v809 = vadd.f32 %v800, %v805
    %v810 = vadd.f32 %v801, %v806
    %v811 = vadd.f32 %v802, %v807
    %v812 = vadd.f32 %v803, %v808
    %v813 = vstv %s102
    %v814 = vmul.f32 %v234, %v813
    %v815 = vmul.f32 %v235, %v813
    %v816 = vmul.f32 %v236, %v813
    %v817 = vmul.f32 %v237, %v813
    %v818 = vadd.f32 %v809, %v814
    %v819 = vadd.f32 %v810, %v815
    %v820 = vadd.f32 %v811, %v816
    %v821 = vadd.f32 %v812, %v817
    %v822 = vstv %s110
    %v823 = vadd.f32 %v818, %v822
    %v824 = vadd.f32 %v819, %v822
    %v825 = vadd.f32 %v820, %v822
    %v826 = vadd.f32 %v821, %v822
    %v827 = vmax.f32 %v823, 0.0
    %v828 = vmax.f32 %v824, 0.0
    %v829 = vmax.f32 %v825, 0.0
    %v830 = vmax.f32 %v826, 0.0
    %v831 = vstv %s118
    %v832 = vmul.f32 %v827, %v831
    %v833 = vmul.f32 %v828, %v831
    %v834 = vmul.f32 %v829, %v831
    %v835 = vmul.f32 %v830, %v831
    %v836 = vadd.f32 %v750, %v832
    %v837 = vadd.f32 %v751, %v833
    %v838 = vadd.f32 %v752, %v834
    %v839 = vadd.f32 %v753, %v835
    %v840 = vstv %s47
    %v841 = vmul.f32 %v136, %v840
    %v842 = vmul.f32 %v137, %v840
    %v843 = vmul.f32 %v138, %v840
    %v844 = vmul.f32 %v139, %v840
    %v845 = vstv %s55
    %v846 = vmul.f32 %v150, %v845
    %v847 = vmul.f32 %v151, %v845
    %v848 = vmul.f32 %v152, %v845
    %v849 = vmul.f32 %v153, %v845
    %v850 = vadd.f32 %v841, %v846
    %v851 = vadd.f32 %v842, %v847
    %v852 = vadd.f32 %v843, %v848
    %v853 = vadd.f32 %v844, %v849
    %v854 = vstv %s63
    %v855 = vmul.f32 %v164, %v854
    %v856 = vmul.f32 %v165, %v854
    %v857 = vmul.f32 %v166, %v854
    %v858 = vmul.f32 %v167, %v854
    %v859 = vadd.f32 %v850, %v855
    %v860 = vadd.f32 %v851, %v856
    %v861 = vadd.f32 %v852, %v857
    %v862 = vadd.f32 %v853, %v858
    %v863 = vstv %s71
    %v864 = vmul.f32 %v178, %v863
    %v865 = vmul.f32 %v179, %v863
    %v866 = vmul.f32 %v180, %v863
    %v867 = vmul.f32 %v181, %v863
    %v868 = vadd.f32 %v859, %v864
    %v869 = vadd.f32 %v860, %v865
    %v870 = vadd.f32 %v861, %v866
    %v871 = vadd.f32 %v862, %v867
    %v872 = vstv %s79
    %v873 = vmul.f32 %v192, %v872
    %v874 = vmul.f32 %v193, %v872
    %v875 = vmul.f32 %v194, %v872
    %v876 = vmul.f32 %v195, %v872
    %v877 = vadd.f32 %v868, %v873
    %v878 = vadd.f32 %v869, %v874
    %v879 = vadd.f32 %v870, %v875
    %v880 = vadd.f32 %v871, %v876
    %v881 = vstv %s87
    %v882 = vmul.f32 %v206, %v881
    %v883 = vmul.f32 %v207, %v881
    %v884 = vmul.f32 %v208, %v881
    %v885 = vmul.f32 %v209, %v881
    %v886 = vadd.f32 %v877, %v882
    %v887 = vadd.f32 %v878, %v883
    %v888 = vadd.f32 %v879, %v884
    %v889 = vadd.f32 %v880, %v885
    %v890 = vstv %s95
    %v891 = vmul.f32 %v220, %v890
    %v892 = vmul.f32 %v221, %v890
    %v893 = vmul.f32 %v222, %v890
    %v894 = vmul.f32 %v223, %v890
    %v895 = vadd.f32 %v886, %v891
    %v896 = vadd.f32 %v887, %v892
    %v897 = vadd.f32 %v888, %v893
    %v898 = vadd.f32 %v889, %v894
    %v899 = vstv %s103
    %v900 = vmul.f32 %v234, %v899
    %v901 = vmul.f32 %v235, %v899
    %v902 = vmul.f32 %v236, %v899
    %v903 = vmul.f32 %v237, %v899
    %v904 = vadd.f32 %v895, %v900
    %v905 = vadd.f32 %v896, %v901
    %v906 = vadd.f32 %v897, %v902
    %v907 = vadd.f32 %v898, %v903
    %v908 = vstv %s111
    %v909 = vadd.f32 %v904, %v908
    %v910 = vadd.f32 %v905, %v908
    %v911 = vadd.f32 %v906, %v908
    %v912 = vadd.f32 %v907, %v908
    %v913 = vmax.f32 %v909, 0.0
    %v914 = vmax.f32 %v910, 0.0
    %v915 = vmax.f32 %v911, 0.0
    %v916 = vmax.f32 %v912, 0.0
    %v917 = vstv %s119
    %v918 = vmul.f32 %v913, %v917
    %v919 = vmul.f32 %v914, %v917
    %v920 = vmul.f32 %v915, %v917
    %v921 = vmul.f32 %v916, %v917
    %v922 = vadd.f32 %v836, %v918
    %v923 = vadd.f32 %v837, %v919
    %v924 = vadd.f32 %v838, %v920
    %v925 = vadd.f32 %v839, %v921
    %926 = vst [vmem:[%s2] sm:$0xff] %v922
    %927 = vst [vmem:[%s2 + $0x8] sm:$0xff] %v923
    %928 = vst [vmem:[%s2 + $0x10] sm:$0xff] %v924
    %929 = vst [vmem:[%s2 + $0x18] sm:$0xff] %v925
    // Predicated region
    $region14: #{simple_regressor.1} parent=1 // pred_check
      _
    $region15: #{simple_regressor.1} parent=1 // pred_check_branch
      %931 = sbr.rel (0) target = $region17
    $region16: #{simple_regressor.1} parent=1 // pred_region
      _
    $region17: #{simple_regressor.1} parent=1 // pred_fallthru
      _
    // Predicated region
    $region18: #{simple_regressor.1} parent=1 // pred_check
      _
    $region19: #{simple_regressor.1} parent=1 // pred_check_branch
      %933 = sbr.rel (0) target = $region21
    $region20: #{simple_regressor.1} parent=1 // pred_region
      _
    $region21: #{simple_regressor.1} parent=1 // pred_fallthru
      _
    %934 = vsyncpa [#allocation3], 1

</llo_original>
